<compile_context>
chip_gen: v7x
topology: tpu7x:2x2x1
jax: 0.10.0
libtpu: 0.0.40
codegen_flags: <defaults>
</compile_context>

<pallas_src>
import jax
import jax.numpy as jnp
from jax.experimental import pallas as pl
from jax.experimental.pallas import tpu as pltpu


def _round_up(n: int, m: int) -> int:
    return ((n + m - 1) // m) * m


# ---------------------------------------------------------------------------
# Kernel: one batch tile = 4 dense MXU matmuls with f32 accumulation.
# ---------------------------------------------------------------------------
def aerac_kernel(x_ref, w_enc_ref, w_hin_ref, w_hout_ref, w_dec_ref, out_ref):
    cdt = w_enc_ref.dtype                       # compute dtype (bf16)
    x = x_ref[...].astype(cdt)                  # in-kernel cast (VPU, free)

    # encode: fused block-diagonal per-window Linear + ReLU        -> (TB, W*E)
    h_cat = jnp.maximum(
        jnp.dot(x, w_enc_ref[...], preferred_element_type=jnp.float32), 0.0)

    # hidden_layer_in + ReLU                                       -> (TB, E)
    h = jnp.maximum(
        jnp.dot(h_cat.astype(cdt), w_hin_ref[...],
                preferred_element_type=jnp.float32), 0.0)

    # decode: hidden_layer_out + ReLU                              -> (TB, W*E)
    h2 = jnp.maximum(
        jnp.dot(h.astype(cdt), w_hout_ref[...],
                preferred_element_type=jnp.float32), 0.0)

    # fused per-window output Linear (lane-padded to N_OUT)        -> (TB, N_OUT)
    out = jnp.dot(h2.astype(cdt), w_dec_ref[...],
                  preferred_element_type=jnp.float32)
    out_ref[...] = out.astype(out_ref.dtype)    # bf16 writeback


# ---------------------------------------------------------------------------
# One-time weight preparation (hoisted out of the per-call forward).
# ---------------------------------------------------------------------------
def prepare_aerac_weights(w_in, w_hin, w_hout, w_out,
                          compute_dtype=jnp.bfloat16):
    """
    w_in   : (W, E, C)   input_acts[i].weight     (PyTorch layout)
    w_hin  : (E, W*E)    hidden_layer_in.weight
    w_hout : (W*E, E)    hidden_layer_out.weight
    w_out  : (W, C, W*E) output_acts[i].weight
    """
    W, E, C = w_in.shape
    n_out = _round_up(W * C, 128)  # lane-pad fused decoder output dim

    # Block-diagonal encoder weight: block i at [i*C:(i+1)*C, i*E:(i+1)*E].
    w_enc = jnp.zeros((W * C, W * E), jnp.float32)
    for i in range(W):
        w_enc = w_enc.at[i * C:(i + 1) * C, i * E:(i + 1) * E].set(w_in[i].T)

    w_hin_t = jnp.transpose(w_hin, (1, 0))      # (W*E, E)
    w_hout_t = jnp.transpose(w_hout, (1, 0))    # (E, W*E)

    # Concatenated decoder weight: columns [i*C:(i+1)*C] = output_acts[i].
    w_dec = jnp.concatenate([w_out[i].T for i in range(W)], axis=1)  # (W*E, W*C)
    w_dec = jnp.pad(w_dec, ((0, 0), (0, n_out - W * C)))             # zero-pad cols

    cast = lambda a: a.astype(compute_dtype)
    prepared = (cast(w_enc), cast(w_hin_t), cast(w_hout_t), cast(w_dec))
    return prepared, (W, C, E)


# ---------------------------------------------------------------------------
# Forward wrapper: batch-tiled pallas_call.
# ---------------------------------------------------------------------------
def aerac_forward(x, prepared, dims, *, tile_b=2048):
    """Returns bf16 logits of shape (B, W, C); window i == out[:, i, :].

    (Same numbers as the PyTorch module's list output, just stacked along a
    middle axis instead of a Python list — consumers should index per window
    rather than forcing a (W, B, C) transpose, which would cost an extra HBM
    round-trip of the whole output.)
    """
    w_enc, w_hin_t, w_hout_t, w_dec = prepared
    W, C, E = dims
    B = x.shape[0]
    n_out = w_dec.shape[1]

    # Batch tile: multiple of 16 sublanes (bf16 output packing), capped at
    # 2048 rows.  Peak VMEM at 2048: ~1.25 MiB x (x, double-buffered) +
    # ~1 MiB out (bf16, double-buffered) + ~3.8 MiB f32 intermediates +
    # ~0.2 MiB weights  ->  well inside the 32 MiB scoped default on v7x.
    tile_b = max(16, min(tile_b, _round_up(B, 16)))
    # Keep the batch grid >= 2 steps when possible so the "parallel" axis can
    # be sharded across both v7x TensorCores (no-op on v5e/v6e, 1 TC).
    if _round_up(B, tile_b) // tile_b < 2 and B > 16:
        tile_b = max(16, _round_up(_round_up(B, 16) // 2, 16))
    b_pad = _round_up(B, tile_b)

    # No wrapper-side dtype cast of x — only zero-pad the batch if needed.
    if b_pad != B:
        x = jnp.pad(x, ((0, b_pad - B), (0, 0)))
    grid = (b_pad // tile_b,)

    # Cost estimate: only the real (non-zero, non-padded) math and bf16 output.
    flops = 2 * b_pad * (W * C * E + W * E * E + E * W * E + W * E * W * C)
    bytes_accessed = (
        b_pad * W * C * x.dtype.itemsize
        + sum(int(w.size) * w.dtype.itemsize for w in prepared)
        + b_pad * n_out * 2)

    out2d = pl.pallas_call(
        aerac_kernel,
        out_shape=jax.ShapeDtypeStruct((b_pad, n_out), jnp.bfloat16),
        grid=grid,
        in_specs=[
            # x: tiled over batch, lane-dense (tile_b, W*C) blocks
            pl.BlockSpec((tile_b, W * C), lambda i: (i, 0)),
            # weights: full-array blocks with constant index maps -> fetched
            # once, VMEM-resident across all grid steps
            # (optionally pipeline_mode=pl.Buffered(1) to drop the second
            #  buffer; ~150 KB of VMEM, skipped here for portability)
            pl.BlockSpec(w_enc.shape, lambda i: (0, 0)),
            pl.BlockSpec(w_hin_t.shape, lambda i: (0, 0)),
            pl.BlockSpec(w_hout_t.shape, lambda i: (0, 0)),
            pl.BlockSpec(w_dec.shape, lambda i: (0, 0)),
        ],
        out_specs=pl.BlockSpec((tile_b, n_out), lambda i: (i, 0)),
        compiler_params=pltpu.CompilerParams(
            dimension_semantics=("parallel",)),
        cost_estimate=pl.CostEstimate(
            flops=flops, transcendentals=0, bytes_accessed=bytes_accessed),
    )(x, w_enc, w_hin_t, w_hout_t, w_dec)

    # Un-pad and expose the lane-dense slab as (B, W, C); no transpose.
    return out2d[:B, :W * C].reshape(B, W, C)


# ---------------------------------------------------------------------------
# Pure-JAX f32 reference mirroring the PyTorch forward.
# ---------------------------------------------------------------------------
def aerac_reference(x, w_in, w_hin, w_hout, w_out):
    W, E, C = w_in.shape
    parts = [jax.nn.relu(x[:, i * C:(i + 1) * C] @ w_in[i].T) for i in range(W)]
    h = jnp.concatenate(parts, axis=-1)
    h = jax.nn.relu(h @ w_hin.T)
    h2 = jax.nn.relu(h @ w_hout.T)
    return jnp.stack([h2 @ w_out[i].T for i in range(W)], axis=0)  # (W, B, C)


# TODO(synk): if x is guaranteed strictly one-hot per window, the encode
# matmul could be replaced by an embedding gather (W int32 indices per row via
# scalar prefetch), shrinking input traffic ~20x; kept dense here because the
# module accepts arbitrary real-valued context vectors.


if __name__ == "__main__":
    # Small shapes consistent with the module.
    num_categories = 16   # C
    win_size = 2          # -> W = 2*win_size + 1 = 5
    emb_size = 32         # E
    batch = 8             # B
    W = 2 * win_size + 1
    C, E, B = num_categories, emb_size, batch

    key = jax.random.PRNGKey(0)
    k_x, k1, k2, k3, k4 = jax.random.split(key, 5)

    def init(k, shape, fan_in):
        bound = 1.0 / jnp.sqrt(float(fan_in))
        return jax.random.uniform(k, shape, jnp.float32, -bound, bound)

    w_in = init(k1, (W, E, C), C)            # input_acts[i].weight   : (E, C)
    w_hin = init(k2, (E, W * E), W * E)      # hidden_layer_in.weight : (E, W*E)
    w_hout = init(k3, (W * E, E), E)         # hidden_layer_out.weight: (W*E, E)
    w_out = init(k4, (W, C, W * E), W * E)   # output_acts[i].weight  : (C, W*E)

    # One-hot-style context input (B, W*C).
    x = jax.random.uniform(k_x, (B, W * C), jnp.float32)

    # Prepare (block-diagonal / fused, bf16) weights once.
    prepared, dims = prepare_aerac_weights(w_in, w_hin, w_hout, w_out,
                                           compute_dtype=jnp.bfloat16)

    fwd = jax.jit(lambda xx: aerac_forward(xx, prepared, dims))
    out = jax.block_until_ready(fwd(x))

    ref = aerac_reference(x, w_in, w_hin, w_hout, w_out)        # (W, B, C)
    ref_bwc = jnp.transpose(ref, (1, 0, 2))                     # (B, W, C)

    assert out.shape == (B, W, C)
    out_f32 = out.astype(jnp.float32)
    max_err = float(jnp.max(jnp.abs(out_f32 - ref_bwc)))
    # bf16 weights/activations/output with f32 accumulation: loosened tol.
    assert jnp.allclose(out_f32, ref_bwc, atol=5e-2, rtol=5e-2), \
        f"max abs diff vs f32 reference: {max_err}"

    print("KERNEL_OK")
</pallas_src>

<mosaic_0001>
module attributes {stable_mosaic.version = 11 : i64} {
  func.func @aerac_kernel(%arg0: i32, %arg1: memref<16x80xf32, #tpu.memory_space<vmem>>, %arg2: memref<80x160xbf16, #tpu.memory_space<vmem>>, %arg3: memref<160x32xbf16, #tpu.memory_space<vmem>>, %arg4: memref<32x160xbf16, #tpu.memory_space<vmem>>, %arg5: memref<160x128xbf16, #tpu.memory_space<vmem>>, %arg6: memref<16x128xbf16, #tpu.memory_space<vmem>>) attributes {dimension_semantics = [#tpu.dimension_semantics<parallel>], iteration_bounds = array<i64: 1>, scalar_prefetch = 0 : i64, scratch_operands = 0 : i64, tpu.core_type = #tpu.core_type<tc>, window_params = [{transform_indices = @transform_0, window_bounds = array<i64: 16, 80>}, {pipeline_mode = #tpu.pipeline_mode<synchronous>, transform_indices = @transform_1, window_bounds = array<i64: 80, 160>}, {pipeline_mode = #tpu.pipeline_mode<synchronous>, transform_indices = @transform_2, window_bounds = array<i64: 160, 32>}, {pipeline_mode = #tpu.pipeline_mode<synchronous>, transform_indices = @transform_3, window_bounds = array<i64: 32, 160>}, {pipeline_mode = #tpu.pipeline_mode<synchronous>, transform_indices = @transform_4, window_bounds = array<i64: 160, 128>}, {transform_indices = @transform_5, window_bounds = array<i64: 16, 128>}]} {
    %c0 = arith.constant 0 : index
    %c0_0 = arith.constant 0 : index
    %0 = vector.load %arg1[%c0, %c0_0] : memref<16x80xf32, #tpu.memory_space<vmem>>, vector<16x80xf32>
    %1 = arith.truncf %0 : vector<16x80xf32> to vector<16x80xbf16>
    %c0_1 = arith.constant 0 : index
    %c0_2 = arith.constant 0 : index
    %2 = vector.load %arg2[%c0_1, %c0_2] : memref<80x160xbf16, #tpu.memory_space<vmem>>, vector<80x160xbf16>
    %cst = arith.constant dense<0.000000e+00> : vector<16x160xf32>
    %3 = tpu.matmul %1, %2, %cst {dimension_numbers = #tpu.dot_dimension_numbers<[1], [0], [0], [1], [0, 0, 1, 1], [], []>} : vector<16x80xbf16>, vector<80x160xbf16>, vector<16x160xf32> -> vector<16x160xf32>
    %cst_3 = arith.constant 0.000000e+00 : f32
    %4 = vector.broadcast %cst_3 : f32 to vector<16x160xf32>
    %5 = arith.maximumf %3, %4 : vector<16x160xf32>
    %6 = arith.truncf %5 : vector<16x160xf32> to vector<16x160xbf16>
    %c0_4 = arith.constant 0 : index
    %c0_5 = arith.constant 0 : index
    %7 = vector.load %arg3[%c0_4, %c0_5] : memref<160x32xbf16, #tpu.memory_space<vmem>>, vector<160x32xbf16>
    %cst_6 = arith.constant dense<0.000000e+00> : vector<16x32xf32>
    %8 = tpu.matmul %6, %7, %cst_6 {dimension_numbers = #tpu.dot_dimension_numbers<[1], [0], [0], [1], [0, 0, 1, 1], [], []>} : vector<16x160xbf16>, vector<160x32xbf16>, vector<16x32xf32> -> vector<16x32xf32>
    %cst_7 = arith.constant 0.000000e+00 : f32
    %9 = vector.broadcast %cst_7 : f32 to vector<16x32xf32>
    %10 = arith.maximumf %8, %9 : vector<16x32xf32>
    %11 = arith.truncf %10 : vector<16x32xf32> to vector<16x32xbf16>
    %c0_8 = arith.constant 0 : index
    %c0_9 = arith.constant 0 : index
    %12 = vector.load %arg4[%c0_8, %c0_9] : memref<32x160xbf16, #tpu.memory_space<vmem>>, vector<32x160xbf16>
    %cst_10 = arith.constant dense<0.000000e+00> : vector<16x160xf32>
    %13 = tpu.matmul %11, %12, %cst_10 {dimension_numbers = #tpu.dot_dimension_numbers<[1], [0], [0], [1], [0, 0, 1, 1], [], []>} : vector<16x32xbf16>, vector<32x160xbf16>, vector<16x160xf32> -> vector<16x160xf32>
    %cst_11 = arith.constant 0.000000e+00 : f32
    %14 = vector.broadcast %cst_11 : f32 to vector<16x160xf32>
    %15 = arith.maximumf %13, %14 : vector<16x160xf32>
    %16 = arith.truncf %15 : vector<16x160xf32> to vector<16x160xbf16>
    %c0_12 = arith.constant 0 : index
    %c0_13 = arith.constant 0 : index
    %17 = vector.load %arg5[%c0_12, %c0_13] : memref<160x128xbf16, #tpu.memory_space<vmem>>, vector<160x128xbf16>
    %cst_14 = arith.constant dense<0.000000e+00> : vector<16x128xf32>
    %18 = tpu.matmul %16, %17, %cst_14 {dimension_numbers = #tpu.dot_dimension_numbers<[1], [0], [0], [1], [0, 0, 1, 1], [], []>} : vector<16x160xbf16>, vector<160x128xbf16>, vector<16x128xf32> -> vector<16x128xf32>
    %19 = arith.truncf %18 : vector<16x128xf32> to vector<16x128xbf16>
    %c0_15 = arith.constant 0 : index
    %c0_16 = arith.constant 0 : index
    %20 = vector.load %arg6[%c0_15, %c0_16] : memref<16x128xbf16, #tpu.memory_space<vmem>>, vector<16x128xbf16>
    tpu.vector_store %arg6[%c0_15, %c0_16], %19 {strides = array<i32>} : memref<16x128xbf16, #tpu.memory_space<vmem>>, vector<16x128xbf16>,
    return
  }
  func.func @transform_0(%arg0: i32) -> (i32, i32) {
    %c0_i32 = arith.constant 0 : i32
    %c0_i32_0 = arith.constant 0 : i32
    return %arg0, %c0_i32 : i32, i32
  }
  func.func @transform_1(%arg0: i32) -> (i32, i32) {
    %c0_i32 = arith.constant 0 : i32
    %c0_i32_0 = arith.constant 0 : i32
    %c0_i32_1 = arith.constant 0 : i32
    return %c0_i32, %c0_i32_0 : i32, i32
  }
  func.func @transform_2(%arg0: i32) -> (i32, i32) {
    %c0_i32 = arith.constant 0 : i32
    %c0_i32_0 = arith.constant 0 : i32
    %c0_i32_1 = arith.constant 0 : i32
    return %c0_i32, %c0_i32_0 : i32, i32
  }
  func.func @transform_3(%arg0: i32) -> (i32, i32) {
    %c0_i32 = arith.constant 0 : i32
    %c0_i32_0 = arith.constant 0 : i32
    %c0_i32_1 = arith.constant 0 : i32
    return %c0_i32, %c0_i32_0 : i32, i32
  }
  func.func @transform_4(%arg0: i32) -> (i32, i32) {
    %c0_i32 = arith.constant 0 : i32
    %c0_i32_0 = arith.constant 0 : i32
    %c0_i32_1 = arith.constant 0 : i32
    return %c0_i32, %c0_i32_0 : i32, i32
  }
  func.func @transform_5(%arg0: i32) -> (i32, i32) {
    %c0_i32 = arith.constant 0 : i32
    %c0_i32_0 = arith.constant 0 : i32
    return %arg0, %c0_i32 : i32, i32
  }
}

</mosaic_0001>

<llo_original>
// kernel: _lambda_.1
$region0: #{_lambda_.1}
  #allocation0 [shape = 'u32[]', space=smem, size = 0x4, offset = 0x4, fixed_abs, tag = 'smem constant byte address 0x4 - core index']
  #allocation1 [shape = 'u32[144,128]{1,0:T(1,128)}', space=vmem, size = 0x12000, scoped, tag = 'internal scratch']
  %s0 = inlined_call_operand.vmem [shape: f32[16,80], index: 0, kind: input, shape index: {}]
  %s1 = inlined_call_operand.vmem [shape: bf16[80,160], index: 1, kind: input, shape index: {}]
  %s2 = inlined_call_operand.vmem [shape: bf16[160,32], index: 2, kind: input, shape index: {}]
  %s3 = inlined_call_operand.vmem [shape: bf16[32,160], index: 3, kind: input, shape index: {}]
  %s4 = inlined_call_operand.vmem [shape: bf16[160,128], index: 4, kind: input, shape index: {}]
  %s5 = inlined_call_operand.vmem [shape: bf16[16,128], index: 5, kind: output, shape index: {}]
  %s6 = sld [smem:[#allocation0]]
  $region30: #{_lambda_.1} parent=0
    _
  %s8 = ssub.s32 1, %s6
  %s9 = scalar_select 0, %s8, %s6
  // Predicated region
  $region2: #{_lambda_.1} parent=0 // pred_check
    _
  $region3: #{_lambda_.1} parent=0 // pred_check_branch
    %11 = sbr.rel (0) target = $region5
  $region4: #{_lambda_.1} parent=0 // pred_region
    _
  $region5: #{_lambda_.1} parent=0 // pred_fallthru
    _
  // Predicated region
  $region6: #{_lambda_.1} parent=0 // pred_check
    _
  $region7: #{_lambda_.1} parent=0 // pred_check_branch
    %13 = sbr.rel (0) target = $region9
  $region8: #{_lambda_.1} parent=0 // pred_region
    _
  $region9: #{_lambda_.1} parent=0 // pred_fallthru
    _
  // Predicated region
  $region10: #{_lambda_.1} parent=0 // pred_check
    _
  $region11: #{_lambda_.1} parent=0 // pred_check_branch
    %15 = sbr.rel (0) target = $region13
  $region12: #{_lambda_.1} parent=0 // pred_region
    _
  $region13: #{_lambda_.1} parent=0 // pred_fallthru
    _
  // Predicated region
  $region14: #{_lambda_.1} parent=0 // pred_check
    _
  $region15: #{_lambda_.1} parent=0 // pred_check_branch
    %17 = sbr.rel (0) target = $region17
  $region16: #{_lambda_.1} parent=0 // pred_region
    _
  $region17: #{_lambda_.1} parent=0 // pred_fallthru
    _
  // Predicated region
  $region18: #{_lambda_.1} parent=0 // pred_check
    _
  $region19: #{_lambda_.1} parent=0 // pred_check_branch
    %19 = sbr.rel (0) target = $region21
  $region20: #{_lambda_.1} parent=0 // pred_region
    _
  $region21: #{_lambda_.1} parent=0 // pred_fallthru
    _
  %v21 = vld [vmem:[%s0] sm:$0xff]
  %v22 = vld [vmem:[%s0 + $0x8] sm:$0xff]
  %v23 = vpack.c.bf16 %v22, %v21
  %v24 = vld [vmem:[%s1] sm:$0xff]
  %v25 = vld [vmem:[%s1 + $0x8] sm:$0xff]
  %v26 = vld [vmem:[%s1 + $0x10] sm:$0xff]
  %v27 = vld [vmem:[%s1 + $0x18] sm:$0xff]
  %v28 = vld [vmem:[%s1 + $0x20] sm:$0xff]
  %v29 = vld [vmem:[%s1 + $0x28] sm:$0xff]
  %v30 = vld [vmem:[%s1 + $0x30] sm:$0xff]
  %v31 = vld [vmem:[%s1 + $0x38] sm:$0xff]
  %v32 = vld [vmem:[%s1 + $0x40] sm:$0xff]
  %v33 = vld [vmem:[%s1 + $0x48] sm:$0xff]
  %v44 = vunpack.c.l.b16 %v24
  %v45 = vunpack.c.h.b16 %v24
  %v46 = vunpack.c.l.b16 %v25
  %v47 = vunpack.c.h.b16 %v25
  %v48 = vunpack.c.l.b16 %v26
  %v49 = vunpack.c.h.b16 %v26
  %v50 = vunpack.c.l.b16 %v27
  %v51 = vunpack.c.h.b16 %v27
  %v52 = vunpack.c.l.b16 %v28
  %v53 = vunpack.c.h.b16 %v28
  %v54 = vunpack.c.l.b16 %v29
  %v55 = vunpack.c.h.b16 %v29
  %v56 = vunpack.c.l.b16 %v30
  %v57 = vunpack.c.h.b16 %v30
  %v58 = vunpack.c.l.b16 %v31
  %v59 = vunpack.c.h.b16 %v31
  %v60 = vunpack.c.l.b16 %v32
  %v61 = vunpack.c.h.b16 %v32
  %v62 = vunpack.c.l.b16 %v33
  %v63 = vunpack.c.h.b16 %v33
  %v64 = vpack.c.b16 %v46, %v44
  %v65 = vpack.c.b16 %v47, %v45
  %v66 = vpack.c.b16 %v50, %v48
  %v67 = vpack.c.b16 %v51, %v49
  %v68 = vpack.c.b16 %v54, %v52
  %v69 = vpack.c.b16 %v55, %v53
  %v70 = vpack.c.b16 %v58, %v56
  %v71 = vpack.c.b16 %v59, %v57
  %v72 = vpack.c.b16 %v62, %v60
  %v73 = vpack.c.b16 %v63, %v61
  %vm84 = vcmask 654336
  %v86 = vsel %vm84, %v23, 0
  %88 = vmatprep.subr.bf16.mxu0 %v65
  %89 = vmatpush1.bf16.msra.mxu0 %v64
  %90 = vmatprep.subr.bf16.mxu0 %v67
  %91 = vmatpush1.bf16.msra.mxu0 %v66
  %92 = vmatprep.subr.bf16.mxu0 %v69
  %93 = vmatpush1.bf16.msra.mxu0 %v68
  %94 = vmatprep.subr.bf16.mxu0 %v71
  %95 = vmatpush1.bf16.msra.mxu0 %v70
  %96 = vmatprep.subr.bf16.mxu0 %v73
  %97 = vmatpush1.bf16.msra.mxu0 %v72
  %98 = vmatprep.subr.bf16.mxu0 0
  %99 = vmatpush1.bf16.msra.mxu0 0
  %100 = vmatprep.subr.bf16.mxu0 0
  %101 = vmatpush1.bf16.msra.mxu0 0
  %102 = vmatprep.subr.bf16.mxu0 0
  %103 = vmatpush1.bf16.msra.mxu0 0
  %104 = vmatprep.subr.bf16.mxu0 0
  %105 = vmatpush1.bf16.msra.mxu0 0
  %106 = vmatprep.subr.bf16.mxu0 0
  %107 = vmatpush1.bf16.msra.mxu0 0
  %108 = vmatprep.subr.bf16.mxu0 0
  %109 = vmatpush1.bf16.msra.mxu0 0
  %110 = vmatprep.subr.bf16.mxu0 0
  %111 = vmatpush1.bf16.msra.mxu0 0
  %112 = vmatprep.subr.bf16.mxu0 0
  %113 = vmatpush1.bf16.msra.mxu0 0
  %114 = vmatprep.subr.bf16.mxu0 0
  %115 = vmatpush1.bf16.msra.mxu0 0
  %116 = vmatprep.subr.bf16.mxu0 0
  %117 = vmatpush1.bf16.msra.mxu0 0
  %118 = vmatprep.subr.bf16.mxu0 0
  %119 = vmatpush1.bf16.msra.mxu0 0
  %120 = vmatprep.mubr.bf16.mxu0 0
  %121 = vmatmul.mubr.bf16.gmra.mrb[0].mxu0 %v86
  %v122 = vpop.f32.mrb[0].mxu0
  %v123 = vadd.f32 0.0, %v122
  %v124 = vpop.f32.mrb[0].mxu0
  %v125 = vadd.f32 0.0, %v124
  %v126 = vpop.f32.mrb[0].mxu0
  %v127 = vadd.f32 0.0, %v126
  %v128 = vpop.f32.mrb[0].mxu0
  %v129 = vadd.f32 0.0, %v128
  %130 = vdwg.mxu0
  %v131 = vmax.f32 %v123, 0.0
  %v132 = vmax.f32 %v125, 0.0
  %v133 = vmax.f32 %v127, 0.0
  %v134 = vmax.f32 %v129, 0.0
  %v135 = vpack.c.bf16 %v133, %v131
  %v136 = vpack.c.bf16 %v134, %v132
  %v137 = vld [vmem:[%s2] sm:$0xf]
  %v138 = vld [vmem:[%s2 + $0x4] sm:$0xf]
  %v139 = vld [vmem:[%s2 + $0x8] sm:$0xf]
  %v140 = vld [vmem:[%s2 + $0xc] sm:$0xf]
  %v141 = vld [vmem:[%s2 + $0x10] sm:$0xf]
  %v142 = vld [vmem:[%s2 + $0x14] sm:$0xf]
  %v143 = vld [vmem:[%s2 + $0x18] sm:$0xf]
  %v144 = vld [vmem:[%s2 + $0x1c] sm:$0xf]
  %v145 = vld [vmem:[%s2 + $0x20] sm:$0xf]
  %v146 = vld [vmem:[%s2 + $0x24] sm:$0xf]
  %v147 = vld [vmem:[%s2 + $0x28] sm:$0xf]
  %v148 = vld [vmem:[%s2 + $0x2c] sm:$0xf]
  %v149 = vld [vmem:[%s2 + $0x30] sm:$0xf]
  %v150 = vld [vmem:[%s2 + $0x34] sm:$0xf]
  %v151 = vld [vmem:[%s2 + $0x38] sm:$0xf]
  %v152 = vld [vmem:[%s2 + $0x3c] sm:$0xf]
  %v153 = vld [vmem:[%s2 + $0x40] sm:$0xf]
  %v154 = vld [vmem:[%s2 + $0x44] sm:$0xf]
  %v155 = vld [vmem:[%s2 + $0x48] sm:$0xf]
  %v156 = vld [vmem:[%s2 + $0x4c] sm:$0xf]
  %v177 = vunpack.c.l.b16 %v137
  %v178 = vunpack.c.l.b16 %v138
  %v179 = vunpack.c.l.b16 %v139
  %v180 = vunpack.c.l.b16 %v140
  %v181 = vunpack.c.l.b16 %v141
  %v182 = vunpack.c.l.b16 %v142
  %v183 = vunpack.c.l.b16 %v143
  %v184 = vunpack.c.l.b16 %v144
  %v185 = vunpack.c.l.b16 %v145
  %v186 = vunpack.c.l.b16 %v146
  %v187 = vunpack.c.l.b16 %v147
  %v188 = vunpack.c.l.b16 %v148
  %v189 = vunpack.c.l.b16 %v149
  %v190 = vunpack.c.l.b16 %v150
  %v191 = vunpack.c.l.b16 %v151
  %v192 = vunpack.c.l.b16 %v152
  %v193 = vunpack.c.l.b16 %v153
  %v194 = vunpack.c.l.b16 %v154
  %v195 = vunpack.c.l.b16 %v155
  %v196 = vunpack.c.l.b16 %v156
  %v197 = vpack.c.b16 %v178, %v177
  %v198 = vpack.c.b16 %v180, %v179
  %v199 = vpack.c.b16 %v182, %v181
  %v200 = vpack.c.b16 %v184, %v183
  %v201 = vpack.c.b16 %v186, %v185
  %v202 = vpack.c.b16 %v188, %v187
  %v203 = vpack.c.b16 %v190, %v189
  %v204 = vpack.c.b16 %v192, %v191
  %v205 = vpack.c.b16 %v194, %v193
  %v206 = vpack.c.b16 %v196, %v195
  %vm217 = vcmask 261120
  %v219 = vsel %vm217, %v136, 0
  %221 = vmatprep.subr.bf16.mxu0 0
  %222 = vmatpush1.bf16.msra.mxu0 %v197
  %223 = vmatprep.subr.bf16.mxu0 0
  %224 = vmatpush1.bf16.msra.mxu0 %v198
  %225 = vmatprep.subr.bf16.mxu0 0
  %226 = vmatpush1.bf16.msra.mxu0 %v199
  %227 = vmatprep.subr.bf16.mxu0 0
  %228 = vmatpush1.bf16.msra.mxu0 %v200
  %229 = vmatprep.subr.bf16.mxu0 0
  %230 = vmatpush1.bf16.msra.mxu0 %v201
  %231 = vmatprep.subr.bf16.mxu0 0
  %232 = vmatpush1.bf16.msra.mxu0 %v202
  %233 = vmatprep.subr.bf16.mxu0 0
  %234 = vmatpush1.bf16.msra.mxu0 %v203
  %235 = vmatprep.subr.bf16.mxu0 0
  %236 = vmatpush1.bf16.msra.mxu0 %v204
  %237 = vmatprep.subr.bf16.mxu0 0
  %238 = vmatpush1.bf16.msra.mxu0 %v205
  %239 = vmatprep.subr.bf16.mxu0 0
  %240 = vmatpush1.bf16.msra.mxu0 %v206
  %241 = vmatprep.subr.bf16.mxu0 0
  %242 = vmatpush1.bf16.msra.mxu0 0
  %243 = vmatprep.subr.bf16.mxu0 0
  %244 = vmatpush1.bf16.msra.mxu0 0
  %245 = vmatprep.subr.bf16.mxu0 0
  %246 = vmatpush1.bf16.msra.mxu0 0
  %247 = vmatprep.subr.bf16.mxu0 0
  %248 = vmatpush1.bf16.msra.mxu0 0
  %249 = vmatprep.subr.bf16.mxu0 0
  %250 = vmatpush1.bf16.msra.mxu0 0
  %251 = vmatprep.subr.bf16.mxu0 0
  %252 = vmatpush1.bf16.msra.mxu0 0
  %253 = vmatprep.mubr.bf16.mxu0 %v219
  %254 = vmatmul.mubr.bf16.gmra.mrb[0].mxu0 %v135
  %v255 = vpop.f32.mrb[0].mxu0
  %v256 = vadd.f32 0.0, %v255
  %v257 = vpop.f32.mrb[0].mxu0
  %v258 = vpop.f32.mrb[0].mxu0
  %v259 = vadd.f32 0.0, %v258
  %v260 = vpop.f32.mrb[0].mxu0
  %261 = vdwg.mxu0
  %v262 = vmax.f32 %v256, 0.0
  %v263 = vmax.f32 %v259, 0.0
  %v264 = vpack.c.bf16 %v263, %v262
  %v265 = vld [vmem:[%s3] sm:$0xff]
  %v266 = vld [vmem:[%s3 + $0x8] sm:$0xff]
  %v267 = vld [vmem:[%s3 + $0x10] sm:$0xff]
  %v268 = vld [vmem:[%s3 + $0x18] sm:$0xff]
  %v273 = vunpack.c.l.b16 %v265
  %v274 = vunpack.c.h.b16 %v265
  %v275 = vunpack.c.l.b16 %v266
  %v276 = vunpack.c.h.b16 %v266
  %v277 = vunpack.c.l.b16 %v267
  %v278 = vunpack.c.h.b16 %v267
  %v279 = vunpack.c.l.b16 %v268
  %v280 = vunpack.c.h.b16 %v268
  %v281 = vpack.c.b16 %v275, %v273
  %v282 = vpack.c.b16 %v276, %v274
  %v283 = vpack.c.b16 %v279, %v277
  %v284 = vpack.c.b16 %v280, %v278
  %v290 = vsel %vm217, %v264, 0
  %292 = vmatprep.subr.bf16.mxu0 %v282
  %293 = vmatpush1.bf16.msra.mxu0 %v281
  %294 = vmatprep.subr.bf16.mxu0 %v284
  %295 = vmatpush1.bf16.msra.mxu0 %v283
  %296 = vmatprep.subr.bf16.mxu0 0
  %297 = vmatpush1.bf16.msra.mxu0 0
  %298 = vmatprep.subr.bf16.mxu0 0
  %299 = vmatpush1.bf16.msra.mxu0 0
  %300 = vmatprep.subr.bf16.mxu0 0
  %301 = vmatpush1.bf16.msra.mxu0 0
  %302 = vmatprep.subr.bf16.mxu0 0
  %303 = vmatpush1.bf16.msra.mxu0 0
  %304 = vmatprep.subr.bf16.mxu0 0
  %305 = vmatpush1.bf16.msra.mxu0 0
  %306 = vmatprep.subr.bf16.mxu0 0
  %307 = vmatpush1.bf16.msra.mxu0 0
  %308 = vmatprep.subr.bf16.mxu0 0
  %309 = vmatpush1.bf16.msra.mxu0 0
  %310 = vmatprep.subr.bf16.mxu0 0
  %311 = vmatpush1.bf16.msra.mxu0 0
  %312 = vmatprep.subr.bf16.mxu0 0
  %313 = vmatpush1.bf16.msra.mxu0 0
  %314 = vmatprep.subr.bf16.mxu0 0
  %315 = vmatpush1.bf16.msra.mxu0 0
  %316 = vmatprep.subr.bf16.mxu0 0
  %317 = vmatpush1.bf16.msra.mxu0 0
  %318 = vmatprep.subr.bf16.mxu0 0
  %319 = vmatpush1.bf16.msra.mxu0 0
  %320 = vmatprep.subr.bf16.mxu0 0
  %321 = vmatpush1.bf16.msra.mxu0 0
  %322 = vmatprep.subr.bf16.mxu0 0
  %323 = vmatpush1.bf16.msra.mxu0 0
  %324 = vmatprep.mubr.bf16.mxu0 0
  %325 = vmatmul.mubr.bf16.gmra.mrb[0].mxu0 %v290
  %v326 = vpop.f32.mrb[0].mxu0
  %v327 = vadd.f32 0.0, %v326
  %v328 = vpop.f32.mrb[0].mxu0
  %v329 = vadd.f32 0.0, %v328
  %v330 = vpop.f32.mrb[0].mxu0
  %v331 = vadd.f32 0.0, %v330
  %v332 = vpop.f32.mrb[0].mxu0
  %v333 = vadd.f32 0.0, %v332
  %334 = vdwg.mxu0
  %v335 = vmax.f32 %v327, 0.0
  %v336 = vmax.f32 %v329, 0.0
  %v337 = vmax.f32 %v331, 0.0
  %v338 = vmax.f32 %v333, 0.0
  %v339 = vpack.c.bf16 %v337, %v335
  %v340 = vpack.c.bf16 %v338, %v336
  %v341 = vld [vmem:[%s4] sm:$0xf]
  %v342 = vld [vmem:[%s4 + $0x4] sm:$0xf]
  %v343 = vld [vmem:[%s4 + $0x8] sm:$0xf]
  %v344 = vld [vmem:[%s4 + $0xc] sm:$0xf]
  %v345 = vld [vmem:[%s4 + $0x10] sm:$0xf]
  %v346 = vld [vmem:[%s4 + $0x14] sm:$0xf]
  %v347 = vld [vmem:[%s4 + $0x18] sm:$0xf]
  %v348 = vld [vmem:[%s4 + $0x1c] sm:$0xf]
  %v349 = vld [vmem:[%s4 + $0x20] sm:$0xf]
  %v350 = vld [vmem:[%s4 + $0x24] sm:$0xf]
  %v351 = vld [vmem:[%s4 + $0x28] sm:$0xf]
  %v352 = vld [vmem:[%s4 + $0x2c] sm:$0xf]
  %v353 = vld [vmem:[%s4 + $0x30] sm:$0xf]
  %v354 = vld [vmem:[%s4 + $0x34] sm:$0xf]
  %v355 = vld [vmem:[%s4 + $0x38] sm:$0xf]
  %v356 = vld [vmem:[%s4 + $0x3c] sm:$0xf]
  %v357 = vld [vmem:[%s4 + $0x40] sm:$0xf]
  %v358 = vld [vmem:[%s4 + $0x44] sm:$0xf]
  %v359 = vld [vmem:[%s4 + $0x48] sm:$0xf]
  %v360 = vld [vmem:[%s4 + $0x4c] sm:$0xf]
  %v381 = vunpack.c.l.b16 %v341
  %v382 = vunpack.c.l.b16 %v342
  %v383 = vunpack.c.l.b16 %v343
  %v384 = vunpack.c.l.b16 %v344
  %v385 = vunpack.c.l.b16 %v345
  %v386 = vunpack.c.l.b16 %v346
  %v387 = vunpack.c.l.b16 %v347
  %v388 = vunpack.c.l.b16 %v348
  %v389 = vunpack.c.l.b16 %v349
  %v390 = vunpack.c.l.b16 %v350
  %v391 = vunpack.c.l.b16 %v351
  %v392 = vunpack.c.l.b16 %v352
  %v393 = vunpack.c.l.b16 %v353
  %v394 = vunpack.c.l.b16 %v354
  %v395 = vunpack.c.l.b16 %v355
  %v396 = vunpack.c.l.b16 %v356
  %v397 = vunpack.c.l.b16 %v357
  %v398 = vunpack.c.l.b16 %v358
  %v399 = vunpack.c.l.b16 %v359
  %v400 = vunpack.c.l.b16 %v360
  %v401 = vpack.c.b16 %v382, %v381
  %v402 = vpack.c.b16 %v384, %v383
  %v403 = vpack.c.b16 %v386, %v385
  %v404 = vpack.c.b16 %v388, %v387
  %v405 = vpack.c.b16 %v390, %v389
  %v406 = vpack.c.b16 %v392, %v391
  %v407 = vpack.c.b16 %v394, %v393
  %v408 = vpack.c.b16 %v396, %v395
  %v409 = vpack.c.b16 %v398, %v397
  %v410 = vpack.c.b16 %v400, %v399
  %v422 = vsel %vm217, %v340, 0
  %424 = vmatprep.subr.bf16.mxu0 0
  %425 = vmatpush1.bf16.msra.mxu0 %v401
  %426 = vmatprep.subr.bf16.mxu0 0
  %427 = vmatpush1.bf16.msra.mxu0 %v402
  %428 = vmatprep.subr.bf16.mxu0 0
  %429 = vmatpush1.bf16.msra.mxu0 %v403
  %430 = vmatprep.subr.bf16.mxu0 0
  %431 = vmatpush1.bf16.msra.mxu0 %v404
  %432 = vmatprep.subr.bf16.mxu0 0
  %433 = vmatpush1.bf16.msra.mxu0 %v405
  %434 = vmatprep.subr.bf16.mxu0 0
  %435 = vmatpush1.bf16.msra.mxu0 %v406
  %436 = vmatprep.subr.bf16.mxu0 0
  %437 = vmatpush1.bf16.msra.mxu0 %v407
  %438 = vmatprep.subr.bf16.mxu0 0
  %439 = vmatpush1.bf16.msra.mxu0 %v408
  %440 = vmatprep.subr.bf16.mxu0 0
  %441 = vmatpush1.bf16.msra.mxu0 %v409
  %442 = vmatprep.subr.bf16.mxu0 0
  %443 = vmatpush1.bf16.msra.mxu0 %v410
  %444 = vmatprep.subr.bf16.mxu0 0
  %445 = vmatpush1.bf16.msra.mxu0 0
  %446 = vmatprep.subr.bf16.mxu0 0
  %447 = vmatpush1.bf16.msra.mxu0 0
  %448 = vmatprep.subr.bf16.mxu0 0
  %449 = vmatpush1.bf16.msra.mxu0 0
  %450 = vmatprep.subr.bf16.mxu0 0
  %451 = vmatpush1.bf16.msra.mxu0 0
  %452 = vmatprep.subr.bf16.mxu0 0
  %453 = vmatpush1.bf16.msra.mxu0 0
  %454 = vmatprep.subr.bf16.mxu0 0
  %455 = vmatpush1.bf16.msra.mxu0 0
  %456 = vmatprep.mubr.bf16.mxu0 %v422
  %457 = vmatmul.mubr.bf16.gmra.mrb[0].mxu0 %v339
  %v458 = vpop.f32.mrb[0].mxu0
  %v459 = vadd.f32 0.0, %v458
  %v460 = vpop.f32.mrb[0].mxu0
  %v461 = vpop.f32.mrb[0].mxu0
  %v462 = vadd.f32 0.0, %v461
  %v463 = vpop.f32.mrb[0].mxu0
  %464 = vdwg.mxu0
  %v465 = vpack.c.bf16 %v462, %v459
  %v467 = vunpack.c.l.b16 %v465
  %v468 = vunpack.c.h.b16 %v465
  %v469 = vpack.c.b16 %v467, %v467
  %v470 = vpack.c.b16 %v468, %v468
  %473 = vst [vmem:[%s5] sm:$0xf] %v469
  %474 = vst [vmem:[%s5 + $0x4] sm:$0xf] %v470
  // Predicated region
  $region22: #{_lambda_.1} parent=0 // pred_check
    _
  $region23: #{_lambda_.1} parent=0 // pred_check_branch
    %476 = sbr.rel (0) target = $region25
  $region24: #{_lambda_.1} parent=0 // pred_region
    _
  $region25: #{_lambda_.1} parent=0 // pred_fallthru
    _
  // Predicated region
  $region26: #{_lambda_.1} parent=0 // pred_check
    _
  $region27: #{_lambda_.1} parent=0 // pred_check_branch
    %478 = sbr.rel (0) target = $region29
  $region28: #{_lambda_.1} parent=0 // pred_region
    _
  $region29: #{_lambda_.1} parent=0 // pred_fallthru
    _

</llo_original>
